<compile_context>
chip_gen: v5e
topology: v5e:2x2
jax: 0.10.0
libtpu: 0.0.40
codegen_flags: <defaults>
</compile_context>

<pallas_src>
import jax
import jax.numpy as jnp
from jax.experimental import pallas as pl
from jax.experimental.pallas import tpu as pltpu

_LANE = 128


def _round_up(a, b):
    return ((a + b - 1) // b) * b


def _sublane_for(dtype):
    """Native sublane multiple for a dtype: 8 (4B), 16 (2B), 32 (1B)."""
    itemsize = jnp.dtype(dtype).itemsize
    return max(8, 32 // max(itemsize, 1))


def _hypersinh_kernel(z_ref, o_ref):
    z = z_ref[...]
    zf = z.astype(jnp.float32)
    # sinh(z)/3 = (e^z - e^-z) / 6.  Two EUP exps (no VPU divide chain); for
    # |z| large enough that exp overflows/underflows this still yields +/-inf,
    # matching torch.sinh semantics, and jnp.where discards the unselected
    # branch per element.
    e_pos = jnp.exp(zf)
    e_neg = jnp.exp(-zf)
    positive_part = (e_pos - e_neg) * (0.5 / 3.0)   # sinh(z) / 3
    negative_part = (zf * zf) * zf * 0.25           # z^3 / 4
    out = jnp.where(zf > 0.0, positive_part, negative_part)
    o_ref[...] = out.astype(o_ref.dtype)


def _hypersinh_2d(x2d, block_rows, sublane):
    """Run the kernel on a lane-dense (rows, 128) slab; rows % sublane == 0."""
    rows, lanes = x2d.shape
    block_rows = min(_round_up(block_rows, sublane), rows)
    # Guarantee >= 2 (roughly balanced) grid steps whenever the slab is
    # splittable so the "parallel" axis shards across both v7x TensorCores
    # (grid=(1,) would pin the whole kernel to one TC / half the HBM BW).
    if rows >= 2 * sublane and rows <= 2 * block_rows:
        block_rows = _round_up(pl.cdiv(rows, 2), sublane)
    grid = (pl.cdiv(rows, block_rows),)

    return pl.pallas_call(
        _hypersinh_kernel,
        out_shape=jax.ShapeDtypeStruct((rows, lanes), x2d.dtype),
        grid_spec=pltpu.PrefetchScalarGridSpec(
            num_scalar_prefetch=0,
            grid=grid,
            in_specs=[pl.BlockSpec((block_rows, lanes), lambda i: (i, 0))],
            out_specs=pl.BlockSpec((block_rows, lanes), lambda i: (i, 0)),
        ),
        compiler_params=pltpu.CompilerParams(
            dimension_semantics=("parallel",),
            # 16 MiB of buffers at block_rows=8192 (f32): raise the scoped
            # limit so v5e's 16 MiB default doesn't reject the unified tile.
            vmem_limit_bytes=32 << 20,
        ),
    )(x2d)


def _hypersinh_jnp(x):
    """Plain-jnp fallback used only for sub-tile ragged tails."""
    xf = x.astype(jnp.float32)
    return jnp.where(xf > 0.0,
                     jnp.sinh(xf) * (1.0 / 3.0),
                     (xf * xf) * xf * 0.25).astype(x.dtype)


def hypersinh(x, *, block_rows=8192):
    """Elementwise HyperSinh, any shape; matches the PyTorch module semantics."""
    orig_shape = x.shape
    dtype = x.dtype
    n = x.size
    if n == 0:
        return x

    sublane = _sublane_for(dtype)
    min_tile = sublane * _LANE          # minimum native (sublane, 128) tile

    x_flat = jnp.ravel(x)               # metadata-only for contiguous inputs
    n_main = (n // min_tile) * min_tile

    if n_main == n:
        # Common aligned case: fully copy-free (ravel/reshape only).
        out2d = _hypersinh_2d(x_flat.reshape(n // _LANE, _LANE),
                              block_rows, sublane)
        return out2d.reshape(orig_shape)

    if n_main == 0:
        # Tiny input (< one native tile): pad to a single tile; these copies
        # touch <= min_tile elements, so cost is irrelevant.
        pad = min_tile - n
        x_pad = jnp.concatenate([x_flat, jnp.zeros((pad,), dtype=dtype)])
        out2d = _hypersinh_2d(x_pad.reshape(sublane, _LANE), block_rows, sublane)
        return out2d.reshape(-1)[:n].reshape(orig_shape)

    # Unaligned: stream the tile-aligned prefix through the kernel and compute
    # the < one-tile ragged tail with plain jnp (no full-array pad/slice).
    out_main = _hypersinh_2d(x_flat[:n_main].reshape(n_main // _LANE, _LANE),
                             block_rows, sublane).reshape(-1)
    out_tail = _hypersinh_jnp(x_flat[n_main:])
    return jnp.concatenate([out_main, out_tail]).reshape(orig_shape)


def hypersinh_ref(x):
    xf = x.astype(jnp.float32)
    return jnp.where(xf > 0, jnp.sinh(xf) / 3.0, xf ** 3 / 4.0).astype(x.dtype)


if __name__ == "__main__":
    # Aligned NCHW case (like the PyTorch module's typical use): zero-copy
    # path, 2-step "parallel" grid.
    x = jax.random.normal(jax.random.PRNGKey(0), (2, 4, 16, 16), dtype=jnp.float32)
    out = jax.block_until_ready(hypersinh(x))
    ref = hypersinh_ref(x)
    assert out.shape == x.shape and out.dtype == x.dtype
    assert jnp.allclose(out, ref, atol=1e-5, rtol=1e-5)

    # Unaligned mid-size case: aligned-prefix kernel + jnp ragged tail.
    x2 = jax.random.normal(jax.random.PRNGKey(1), (5, 300), dtype=jnp.float32)
    out2 = jax.block_until_ready(hypersinh(x2))
    ref2 = hypersinh_ref(x2)
    assert out2.shape == x2.shape and out2.dtype == x2.dtype
    assert jnp.allclose(out2, ref2, atol=1e-5, rtol=1e-5)

    # Tiny case (< one native tile): minimal single-tile pad path.
    x3 = jax.random.normal(jax.random.PRNGKey(2), (3, 5, 7), dtype=jnp.float32)
    out3 = jax.block_until_ready(hypersinh(x3))
    ref3 = hypersinh_ref(x3)
    assert out3.shape == x3.shape and out3.dtype == x3.dtype
    assert jnp.allclose(out3, ref3, atol=1e-5, rtol=1e-5)

    # bf16 case: exercises the dtype-aware (16, 128) tile granularity.
    x4 = jax.random.normal(jax.random.PRNGKey(3), (4, 8, 64), dtype=jnp.bfloat16)
    out4 = jax.block_until_ready(hypersinh(x4))
    ref4 = hypersinh_ref(x4)
    assert out4.shape == x4.shape and out4.dtype == x4.dtype
    assert jnp.allclose(out4.astype(jnp.float32), ref4.astype(jnp.float32),
                        atol=2e-2, rtol=2e-2)

    print("KERNEL_OK")
</pallas_src>

<mosaic_0001>
module attributes {stable_mosaic.version = 11 : i64} {
  func.func @_hypersinh_kernel(%arg0: i32, %arg1: memref<8x128xf32, #tpu.memory_space<vmem>>, %arg2: memref<8x128xf32, #tpu.memory_space<vmem>>) attributes {dimension_semantics = [#tpu.dimension_semantics<parallel>], iteration_bounds = array<i64: 2>, scalar_prefetch = 0 : i64, scratch_operands = 0 : i64, tpu.core_type = #tpu.core_type<tc>, window_params = [{transform_indices = @transform_0, window_bounds = array<i64: 8, 128>}, {transform_indices = @transform_1, window_bounds = array<i64: 8, 128>}]} {
    %c0 = arith.constant 0 : index
    %c0_0 = arith.constant 0 : index
    %0 = vector.load %arg1[%c0, %c0_0] : memref<8x128xf32, #tpu.memory_space<vmem>>, vector<8x128xf32>
    %1 = math.exp %0 : vector<8x128xf32>
    %cst = arith.constant 0.000000e+00 : f32
    %2 = vector.broadcast %cst : f32 to vector<8x128xf32>
    %3 = arith.subf %2, %0 : vector<8x128xf32>
    %4 = math.exp %3 : vector<8x128xf32>
    %5 = arith.subf %1, %4 : vector<8x128xf32>
    %cst_1 = arith.constant 0.166666672 : f32
    %6 = vector.broadcast %cst_1 : f32 to vector<8x128xf32>
    %7 = arith.mulf %5, %6 : vector<8x128xf32>
    %8 = arith.mulf %0, %0 : vector<8x128xf32>
    %9 = arith.mulf %8, %0 : vector<8x128xf32>
    %cst_2 = arith.constant 2.500000e-01 : f32
    %10 = vector.broadcast %cst_2 : f32 to vector<8x128xf32>
    %11 = arith.mulf %9, %10 : vector<8x128xf32>
    %cst_3 = arith.constant 0.000000e+00 : f32
    %12 = vector.broadcast %cst_3 : f32 to vector<8x128xf32>
    %13 = arith.cmpf ogt, %0, %12 : vector<8x128xf32>
    %14 = arith.select %13, %7, %11 : vector<8x128xi1>, vector<8x128xf32>
    %c0_4 = arith.constant 0 : index
    %c0_5 = arith.constant 0 : index
    %15 = vector.load %arg2[%c0_4, %c0_5] : memref<8x128xf32, #tpu.memory_space<vmem>>, vector<8x128xf32>
    tpu.vector_store %arg2[%c0_4, %c0_5], %14 {strides = array<i32>} : memref<8x128xf32, #tpu.memory_space<vmem>>, vector<8x128xf32>,
    return
  }
  func.func @transform_0(%arg0: i32) -> (i32, i32) {
    %c0_i32 = arith.constant 0 : i32
    %c0_i32_0 = arith.constant 0 : i32
    return %arg0, %c0_i32 : i32, i32
  }
  func.func @transform_1(%arg0: i32) -> (i32, i32) {
    %c0_i32 = arith.constant 0 : i32
    %c0_i32_0 = arith.constant 0 : i32
    return %arg0, %c0_i32 : i32, i32
  }
}

</mosaic_0001>

<llo_original>
// kernel: tpu_custom_call.1
$region0: #{tpu_custom_call.1}
  #allocation0 [shape = 'u32[]', space=smem, size = 0x4, offset = 0x4, fixed_abs, tag = 'smem constant byte address 0x4 - core index']
  #allocation1 [shape = 'u32[72,128]{1,0:T(1,128)}', space=vmem, size = 0x9000, scoped, tag = 'internal scratch']
  %s0 = inlined_call_operand.hbm [shape: f32[16,128], index: 0, kind: input, shape index: {}]
  %s1 = inlined_call_operand.hbm [shape: f32[16,128], index: 1, kind: output, shape index: {}]
  %s2 = sld [smem:[#allocation0]]
  $region41: #{tpu_custom_call.1} parent=0
    _
  %s4 = ssub.s32 1, %s2
  %s5 = scalar_select 0, %s4, %s2
  $region1: #{tpu_custom_call.1} parent=0
    #allocation2 [shape = 'u8[8192]{0}', space=vmem, size = 0x2000, scoped, tag = 'input window, operand 0']
    #allocation3 [shape = 's32[2]{0}', space=sflag, size = 0x8, scoped, tag = 'scoped memory for tpu_custom_call.1']
    #allocation4 [shape = 's32[2]{0}', space=sflag, size = 0x8, scoped, tag = 'scoped memory for tpu_custom_call.1']
    #allocation5 [shape = 'u8[8192]{0}', space=vmem, size = 0x2000, scoped, tag = 'output window, operand 0']
    %6 = vsyncpa [#allocation3], 0
    %s7 = scalar_lea.sflag [#allocation3], 1
    %8 = vsyncpa %s7, 0
    %9 = vsyncpa [#allocation4], 0
    %s10 = scalar_lea.sflag [#allocation4], 1
    %11 = vsyncpa %s10, 0
    loop: start=0, step=1, limit=4
    $region2: #{tpu_custom_call.1} parent=1 // loop_pre_header
      _
    $region3: #{tpu_custom_call.1} parent=1 // loop_header
      %s13 = sphi 0, %s17
      %p14 = scmp.ge.s32.totalorder %s13, 4
      %s23 = sphi 0, %s25
      %s26 = sphi 0, %s23
      %s27 = sphi 0, %s26
      %s43 = sphi 0, %s27
      %s49 = sphi 0, %s51
      %s52 = sphi 0, %s49
      %s53 = sphi 0, %s52
      %s69 = sphi 0, %s53
    $region4: #{tpu_custom_call.1} parent=1 // loop_header_branch
      %16 = sbr.rel (%p14) target = $region8
    $region5: #{tpu_custom_call.1} parent=1 // loop_body
      %s18 = ssub.s32 %s13, 1
      %s19 = ssub.s32 %s13, 2
      %s20 = sadd.s32 %s13, 1
      %s21 = ssub.s32 %s13, %s20
      %p22 = scmp.eq.s32.totalorder %s21, 0
      %s24 = sadd.s32 %s23, 1
      %s25 = scalar_select %p22, %s23, %s24
      %p28 = pneg %p22
      %p29 = scmp.eq.s32.totalorder %s13, 1
      %p30 = por %p28, %p29
      %p31 = scmp.ne.s32.totalorder %s23, %s26
      %p32 = scmp.eq.s32.totalorder %s13, 0
      %p33 = por %p31, %p32
      %p34 = scmp.ne.s32.totalorder %s23, %s26
      %p35 = scmp.eq.s32.totalorder %s18, 1
      %p36 = por %p34, %p35
      %p37 = scmp.ne.s32.totalorder %s26, %s27
      %p38 = scmp.eq.s32.totalorder %s18, 0
      %p39 = por %p37, %p38
      %p40 = scmp.ne.s32.totalorder %s26, %s27
      %p41 = scmp.eq.s32.totalorder %s19, 1
      %p42 = por %p40, %p41
      %p44 = scmp.ne.s32.totalorder %s27, %s43
      %p45 = scmp.eq.s32.totalorder %s19, 0
      %p46 = por %p44, %p45
      %s47 = ssub.s32 %s13, %s20
      %p48 = scmp.eq.s32.totalorder %s47, 0
      %s50 = sadd.s32 %s49, 1
      %s51 = scalar_select %p48, %s49, %s50
      %p54 = pneg %p48
      %p55 = scmp.eq.s32.totalorder %s13, 1
      %p56 = por %p54, %p55
      %p57 = scmp.ne.s32.totalorder %s49, %s52
      %p58 = scmp.eq.s32.totalorder %s13, 0
      %p59 = por %p57, %p58
      %p60 = scmp.ne.s32.totalorder %s49, %s52
      %p61 = scmp.eq.s32.totalorder %s18, 1
      %p62 = por %p60, %p61
      %p63 = scmp.ne.s32.totalorder %s52, %s53
      %p64 = scmp.eq.s32.totalorder %s18, 0
      %p65 = por %p63, %p64
      %p66 = scmp.ne.s32.totalorder %s52, %s53
      %p67 = scmp.eq.s32.totalorder %s19, 1
      %p68 = por %p66, %p67
      %p70 = scmp.ne.s32.totalorder %s53, %s69
      %p71 = scmp.eq.s32.totalorder %s19, 0
      %p72 = por %p70, %p71
      %p73 = scmp.le.s32.totalorder 1, %s13
      %p74 = scmp.lt.s32.totalorder %s13, 3
      %p75 = pnand %p73, %p74
      %p76 = pneg %p75
      // Predicated region
      $region9: #{tpu_custom_call.1} parent=5 // pred_check
        _
      $region10: #{tpu_custom_call.1} parent=5 // pred_check_branch
        %78 = sbr.rel (%p75) target = $region12
      $region11: #{tpu_custom_call.1} parent=5 // pred_region
        %s79 = ssub.s32 %s13, 1
      $region12: #{tpu_custom_call.1} parent=5 // pred_fallthru
        _
      %p80 = scmp.lt.s32.totalorder %s13, 2
      // Predicated region
      $region13: #{tpu_custom_call.1} parent=5 // pred_check
        %p81 = pneg %p80
      $region14: #{tpu_custom_call.1} parent=5 // pred_check_branch
        %83 = sbr.rel (%p81) target = $region16
      $region15: #{tpu_custom_call.1} parent=5 // pred_region
        // Predicated region
        $region17: #{tpu_custom_call.1} parent=15 // pred_check
          %p84 = pneg %p33
        $region18: #{tpu_custom_call.1} parent=15 // pred_check_branch
          %86 = sbr.rel (%p84) target = $region20
        $region19: #{tpu_custom_call.1} parent=15 // pred_region
          %s87 = sand.u32 %s23, 1
          %s88 = scalar_lea.sflag [#allocation3], %s87
          %s89 = sand.u32 %s23, 1
          %s90 = smul.addr %s89, 8
          %s91 = scalar_lea.vmem [#allocation2], %s90
          %93 = vsyncadd %s88, 0
          %s94 = smul.addr %s13, 8
          %s95 = scalar_lea.hbm %s0, %s94
          %s97 = sshll.u32 %s95, 4
          %s98 = int_to_ptr.hbm [resolvable:$true] %s97
          %s99 = sshll.u32 %s91, 4
          %s100 = int_to_ptr.vmem [resolvable:$true] %s99
          %102 = dma.hbm_to_vmem [thread:$0]  %s98, 128, %s100, %s88
        $region20: #{tpu_custom_call.1} parent=15 // pred_fallthru
          _
      $region16: #{tpu_custom_call.1} parent=5 // pred_fallthru
        _
      %p103 = scmp.le.s32.totalorder 1, %s13
      %p104 = scmp.lt.s32.totalorder %s13, 3
      %p105 = pnand %p103, %p104
      %p106 = pneg %p105
      // Predicated region
      $region21: #{tpu_custom_call.1} parent=5 // pred_check
        _
      $region22: #{tpu_custom_call.1} parent=5 // pred_check_branch
        %108 = sbr.rel (%p105) target = $region24
      $region23: #{tpu_custom_call.1} parent=5 // pred_region
        %s109 = ssub.s32 %s13, 1
        %s110 = sand.u32 %s26, 1
        %s111 = scalar_lea.sflag [#allocation3], %s110
        %s112 = sand.u32 %s26, 1
        %s113 = smul.addr %s112, 8
        %s114 = scalar_lea.vmem [#allocation2], %s113
        // Predicated region
        $region25: #{tpu_custom_call.1} parent=23 // pred_check
          %p115 = pneg %p39
        $region26: #{tpu_custom_call.1} parent=23 // pred_check_branch
          %117 = sbr.rel (%p115) target = $region28
        $region27: #{tpu_custom_call.1} parent=23 // pred_region
          %119 = dma.done %s111, 128
        $region28: #{tpu_custom_call.1} parent=23 // pred_fallthru
          _
        %s120 = sand.u32 %s26, 1
        %s121 = scalar_lea.sflag [#allocation3], %s120
        %s122 = sand.u32 %s26, 1
        %s123 = smul.addr %s122, 8
        %s124 = scalar_lea.vmem [#allocation2], %s123
        %p125 = pneg %p39
        %p126 = pneg %p36
        %p127 = pneg %p65
        %p128 = pneg %p62
        %s129 = sand.u32 %s52, 1
        %s130 = scalar_lea.sflag [#allocation4], %s129
        %s131 = sand.u32 %s52, 1
        %s132 = smul.addr %s131, 8
        %s133 = scalar_lea.vmem [#allocation5], %s132
        %v134 = vld [vmem:[%s114] sm:$0xff]
        %v135 = vmul.f32 %v134, 1.442695
        %v136 = vpow.pop %v135
        %v137 = vsub.f32 0.0, %v134
        %v138 = vmul.f32 %v137, 1.442695
        %v139 = vpow.pop %v138
        %v140 = vsub.f32 %v136, %v139
        %v141 = vmul.f32 %v140, 0.16666667
        %v142 = vmul.f32 %v134, %v134
        %v143 = vmul.f32 %v142, %v134
        %v144 = vmul.f32 %v143, 0.25
        %vm145 = vcmp.gt.f32.partialorder %v134, 0.0
        %v146 = vsel %vm145, %v141, %v144
        %147 = vst [vmem:[%s133] sm:$0xff] %v146
        %s148 = sand.u32 %s52, 1
        %s149 = scalar_lea.sflag [#allocation4], %s148
        %s150 = sand.u32 %s52, 1
        %s151 = smul.addr %s150, 8
        %s152 = scalar_lea.vmem [#allocation5], %s151
        // Predicated region
        $region29: #{tpu_custom_call.1} parent=23 // pred_check
          %p153 = pneg %p62
        $region30: #{tpu_custom_call.1} parent=23 // pred_check_branch
          %155 = sbr.rel (%p153) target = $region32
        $region31: #{tpu_custom_call.1} parent=23 // pred_region
          %157 = vsyncadd %s149, 0
          %s158 = smul.addr %s18, 8
          %s159 = scalar_lea.hbm %s1, %s158
          %s161 = sshll.u32 %s152, 4
          %s162 = int_to_ptr.vmem [resolvable:$true] %s161
          %s163 = sshll.u32 %s159, 4
          %s164 = int_to_ptr.hbm [resolvable:$true] %s163
          %166 = dma.vmem_to_hbm [thread:$0]  %s162, 128, %s164, %s149
        $region32: #{tpu_custom_call.1} parent=23 // pred_fallthru
          _
      $region24: #{tpu_custom_call.1} parent=5 // pred_fallthru
        _
      %p167 = scmp.le.s32.totalorder 2, %s13
      // Predicated region
      $region33: #{tpu_custom_call.1} parent=5 // pred_check
        %p168 = pneg %p167
      $region34: #{tpu_custom_call.1} parent=5 // pred_check_branch
        %170 = sbr.rel (%p168) target = $region36
      $region35: #{tpu_custom_call.1} parent=5 // pred_region
        %s171 = ssub.s32 %s13, 2
        // Predicated region
        $region37: #{tpu_custom_call.1} parent=35 // pred_check
          %p172 = pneg %p68
        $region38: #{tpu_custom_call.1} parent=35 // pred_check_branch
          %174 = sbr.rel (%p172) target = $region40
        $region39: #{tpu_custom_call.1} parent=35 // pred_region
          %s175 = sand.u32 %s53, 1
          %s176 = scalar_lea.sflag [#allocation4], %s175
          %s177 = sand.u32 %s53, 1
          %s178 = smul.addr %s177, 8
          %s179 = scalar_lea.vmem [#allocation5], %s178
          %181 = dma.done %s176, 128
        $region40: #{tpu_custom_call.1} parent=35 // pred_fallthru
          _
      $region36: #{tpu_custom_call.1} parent=5 // pred_fallthru
        _
    $region6: #{tpu_custom_call.1} parent=1 // loop_footer
      %s17 = sadd.s32 1, %s13
    $region7: #{tpu_custom_call.1} parent=1 // loop_footer_branch
      %12 = sbr.rel target = $region3
    $region8: #{tpu_custom_call.1} parent=1 // loop_exit
      _
    %182 = vsyncpa [#allocation3], 1
    %s183 = scalar_lea.sflag [#allocation3], 1
    %184 = vsyncpa %s183, 1
    %185 = vsyncpa [#allocation4], 1
    %s186 = scalar_lea.sflag [#allocation4], 1
    %187 = vsyncpa %s186, 1

</llo_original>
